<compile_context>
chip_gen: v7x
topology: tpu7x:2x2x1
jax: 0.10.0
libtpu: 0.0.40
codegen_flags: <defaults>
</compile_context>

<pallas_src>
import jax
import jax.numpy as jnp
from jax.experimental import pallas as pl
from jax.experimental.pallas import tpu as pltpu


_SUBLANE = 8                      # f32 sublane granularity for the batch tile
_MIB = 1024 * 1024


def _round_up(x, m):
    return ((x + m - 1) // m) * m


def _cdiv(a, b):
    return -(-a // b)


def _vmem_caps_bytes():
    """(budget, limit_cap): generation-aware VMEM budget for tile sizing and a
    cap for vmem_limit_bytes.  Falls back to v7x-safe constants."""
    cap = None
    try:
        info = pltpu.get_tpu_info()
        cap = getattr(info, "vmem_capacity_bytes", None)
    except Exception:
        cap = None
    if cap:
        return int(0.72 * cap), int(0.78 * cap)
    # Unknown chip: be safe for v7x (64 MiB physical per TensorCore).
    return 44 * _MIB, 50 * _MIB


def _estimate_vmem_bytes(bm, d_in, d_emb, d_out, x_sz, t_sz, w_sz, o_sz):
    # Double-buffered activation tiles (x, t in, out at its own dtype).
    io = 2 * bm * (d_in * x_sz + d_emb * t_sz + d_out * o_sz)
    # Grid-constant weights + biases (DMA'd once, but default double-buffered).
    w = 2 * ((d_in + d_emb + d_out) * d_out * w_sz + 3 * d_out * 4)
    # In-kernel f32 intermediates (h1, ht, h, h2) + in-kernel casts of x/t.
    tmp = 4 * bm * d_out * 4 + bm * (d_in + d_emb) * w_sz
    # Headroom for compiler internal scratch / semaphores.
    return io + w + tmp + 2 * _MIB


def _choose_batch_tiling(B, est_fn, budget, bm_max):
    bm = max(_SUBLANE, min(bm_max, _round_up(B, _SUBLANE)))
    # Shrink only if the VMEM estimate blows the (generation-aware) budget.
    while bm > _SUBLANE and est_fn(bm) > budget:
        bm = max(_SUBLANE, _round_up(bm // 2, _SUBLANE))
    grid_m = _cdiv(B, bm)
    # Prefer an even number of grid steps (v7x: 2 TensorCores per chip) and at
    # least 2 steps whenever tiles stay >= ~128 rows, so the second core is not
    # idle and prefetch/writeback overlaps compute.  On 1-TC chips the extra
    # step costs < 1 us.
    if grid_m % 2 == 1 and B >= 2 * 128:
        grid_m += 1
    bm = _round_up(_cdiv(B, grid_m), _SUBLANE)   # rebalance -> minimal tail waste
    grid_m = _cdiv(B, bm)
    return bm, grid_m


def encoding_block_kernel(x_ref, t_ref, w1_ref, b1_ref, wt_ref, bt_ref,
                          w2_ref, b2_ref, out_ref):
    cdt = w1_ref.dtype    # compute dtype of the MXU operands (weights' dtype)

    # layer1: relu(x @ W1 + b1)  -- MXU dot, f32 accumulate, f32 epilogue.
    h1 = jnp.dot(x_ref[...].astype(cdt), w1_ref[...],
                 preferred_element_type=jnp.float32)
    h1 = jnp.maximum(h1 + b1_ref[...], 0.0)

    # temb_proj: relu(t @ Wt + bt)
    ht = jnp.dot(t_ref[...].astype(cdt), wt_ref[...],
                 preferred_element_type=jnp.float32)
    ht = jnp.maximum(ht + bt_ref[...], 0.0)

    h = (h1 + ht).astype(cdt)

    # layer2: relu(h @ W2 + b2)
    h2 = jnp.dot(h, w2_ref[...], preferred_element_type=jnp.float32)
    h2 = jnp.maximum(h2 + b2_ref[...], 0.0)

    out_ref[...] = h2.astype(out_ref.dtype)


def encoding_block(x, t, params, *, bm_max=1024, compute_dtype=None):
    """Pallas EncodingBlock.forward.

    x: [B, input_dim], t: [B, embed_dim]  ->  (out, skip) both [B, output_dim]
    """
    w1, b1, wt, bt, w2, b2 = params
    B, d_in = x.shape
    Bt, d_emb = t.shape
    assert Bt == B, "x and t must share the batch dimension"
    d_out = w1.shape[1]
    out_dtype = x.dtype

    # Cast only the grid-resident weights (DMA'd once) when a narrower compute
    # dtype is requested; activations keep their HBM dtype (no wrapper pass).
    if compute_dtype is not None:
        w1 = w1.astype(compute_dtype)
        wt = wt.astype(compute_dtype)
        w2 = w2.astype(compute_dtype)
    # Biases always f32: pure-f32 bias+relu epilogue.
    b1 = jnp.reshape(b1, (1, d_out)).astype(jnp.float32)
    bt = jnp.reshape(bt, (1, d_out)).astype(jnp.float32)
    b2 = jnp.reshape(b2, (1, d_out)).astype(jnp.float32)

    x_sz = x.dtype.itemsize
    t_sz = t.dtype.itemsize
    w_sz = w1.dtype.itemsize
    o_sz = jnp.dtype(out_dtype).itemsize

    budget, limit_cap = _vmem_caps_bytes()
    est = lambda m: _estimate_vmem_bytes(m, d_in, d_emb, d_out,
                                         x_sz, t_sz, w_sz, o_sz)
    bm, grid_m = _choose_batch_tiling(B, est, budget, bm_max)

    vmem_need = est(bm)
    vmem_limit = int(min(limit_cap, max(32 * _MIB, int(1.25 * vmem_need))))

    flops = 2 * B * d_out * (d_in + d_emb + d_out)
    bytes_accessed = (B * (d_in * x_sz + d_emb * t_sz + d_out * o_sz)
                      + (d_in + d_emb + d_out) * d_out * w_sz
                      + 3 * d_out * 4)

    out = pl.pallas_call(
        encoding_block_kernel,
        out_shape=jax.ShapeDtypeStruct((B, d_out), out_dtype),
        grid_spec=pltpu.PrefetchScalarGridSpec(
            num_scalar_prefetch=0,
            grid=(grid_m,),
            in_specs=[
                pl.BlockSpec((bm, d_in), lambda i: (i, 0)),      # x tile
                pl.BlockSpec((bm, d_emb), lambda i: (i, 0)),     # t tile
                pl.BlockSpec((d_in, d_out), lambda i: (0, 0)),   # W1 (resident)
                pl.BlockSpec((1, d_out), lambda i: (0, 0)),      # b1
                pl.BlockSpec((d_emb, d_out), lambda i: (0, 0)),  # Wt (resident)
                pl.BlockSpec((1, d_out), lambda i: (0, 0)),      # bt
                pl.BlockSpec((d_out, d_out), lambda i: (0, 0)),  # W2 (resident)
                pl.BlockSpec((1, d_out), lambda i: (0, 0)),      # b2
            ],
            out_specs=pl.BlockSpec((bm, d_out), lambda i: (i, 0)),
        ),
        compiler_params=pltpu.CompilerParams(
            dimension_semantics=("parallel",),
            vmem_limit_bytes=vmem_limit),
        cost_estimate=pl.CostEstimate(flops=int(flops), transcendentals=0,
                                      bytes_accessed=int(bytes_accessed)),
    )(x, t, w1, b1, wt, bt, w2, b2)

    skip_connection = out
    return out, skip_connection


def init_params(key, input_dim, output_dim, embed_dim, dtype=jnp.float32):
    """Deterministic synthetic init (PyTorch Linear shapes, pre-transposed)."""
    ks = jax.random.split(key, 6)
    scale1 = 1.0 / jnp.sqrt(input_dim)
    scalet = 1.0 / jnp.sqrt(embed_dim)
    scale2 = 1.0 / jnp.sqrt(output_dim)
    w1 = jax.random.uniform(ks[0], (input_dim, output_dim), dtype, -scale1, scale1)
    b1 = jax.random.uniform(ks[1], (1, output_dim), dtype, -scale1, scale1)
    wt = jax.random.uniform(ks[2], (embed_dim, output_dim), dtype, -scalet, scalet)
    bt = jax.random.uniform(ks[3], (1, output_dim), dtype, -scalet, scalet)
    w2 = jax.random.uniform(ks[4], (output_dim, output_dim), dtype, -scale2, scale2)
    b2 = jax.random.uniform(ks[5], (1, output_dim), dtype, -scale2, scale2)
    return (w1, b1, wt, bt, w2, b2)


def reference(x, t, params):
    w1, b1, wt, bt, w2, b2 = params
    h = jnp.maximum(x @ w1 + b1, 0.0)
    h = h + jnp.maximum(t @ wt + bt, 0.0)
    out = jnp.maximum(h @ w2 + b2, 0.0)
    return out, out


if __name__ == "__main__":
    key = jax.random.PRNGKey(0)
    kx, kt, kp, kx2, kt2, kp2 = jax.random.split(key, 6)

    # --- small toy-config test (CoDi-like dims), f32, tight tolerance -------
    B, input_dim, output_dim, embed_dim = 8, 16, 32, 64
    x = jax.random.normal(kx, (B, input_dim), jnp.float32)
    t = jax.random.normal(kt, (B, embed_dim), jnp.float32)
    params = init_params(kp, input_dim, output_dim, embed_dim)

    out, skip = encoding_block(x, t, params)
    out = jax.block_until_ready(out)
    skip = jax.block_until_ready(skip)
    ref_out, _ = reference(x, t, params)
    assert out.shape == (B, output_dim)
    assert jnp.allclose(out, ref_out, rtol=1e-5, atol=1e-5)
    assert jnp.allclose(skip, out)

    # --- ragged batch, multi-step grid, f32 (exercises the partial block) ---
    B2, d_in2, d_out2, d_emb2 = 300, 24, 48, 96
    x2 = jax.random.normal(kx2, (B2, d_in2), jnp.float32)
    t2 = jax.random.normal(kt2, (B2, d_emb2), jnp.float32)
    params2 = init_params(kp2, d_in2, d_out2, d_emb2)

    out2, _ = encoding_block(x2, t2, params2)
    out2 = jax.block_until_ready(out2)
    ref2, _ = reference(x2, t2, params2)
    assert out2.shape == (B2, d_out2)
    assert jnp.allclose(out2, ref2, rtol=1e-5, atol=1e-5)

    # --- same shapes, bf16 weights (resident-only cast), loose tolerance ----
    out3, _ = encoding_block(x2, t2, params2, compute_dtype=jnp.bfloat16)
    out3 = jax.block_until_ready(out3)
    assert out3.shape == (B2, d_out2)
    assert jnp.allclose(out3, ref2, rtol=1e-1, atol=1e-1)

    print("KERNEL_OK")
</pallas_src>

<mosaic_0001>
module attributes {stable_mosaic.version = 11 : i64} {
  func.func @encoding_block_kernel(%arg0: i32, %arg1: memref<8x16xf32, #tpu.memory_space<vmem>>, %arg2: memref<8x64xf32, #tpu.memory_space<vmem>>, %arg3: memref<16x32xf32, #tpu.memory_space<vmem>>, %arg4: memref<1x32xf32, #tpu.memory_space<vmem>>, %arg5: memref<64x32xf32, #tpu.memory_space<vmem>>, %arg6: memref<1x32xf32, #tpu.memory_space<vmem>>, %arg7: memref<32x32xf32, #tpu.memory_space<vmem>>, %arg8: memref<1x32xf32, #tpu.memory_space<vmem>>, %arg9: memref<8x32xf32, #tpu.memory_space<vmem>>) attributes {dimension_semantics = [#tpu.dimension_semantics<parallel>], iteration_bounds = array<i64: 1>, scalar_prefetch = 0 : i64, scratch_operands = 0 : i64, tpu.core_type = #tpu.core_type<tc>, window_params = [{transform_indices = @transform_0, window_bounds = array<i64: 8, 16>}, {transform_indices = @transform_1, window_bounds = array<i64: 8, 64>}, {pipeline_mode = #tpu.pipeline_mode<synchronous>, transform_indices = @transform_2, window_bounds = array<i64: 16, 32>}, {pipeline_mode = #tpu.pipeline_mode<synchronous>, transform_indices = @transform_3, window_bounds = array<i64: 1, 32>}, {pipeline_mode = #tpu.pipeline_mode<synchronous>, transform_indices = @transform_4, window_bounds = array<i64: 64, 32>}, {pipeline_mode = #tpu.pipeline_mode<synchronous>, transform_indices = @transform_5, window_bounds = array<i64: 1, 32>}, {pipeline_mode = #tpu.pipeline_mode<synchronous>, transform_indices = @transform_6, window_bounds = array<i64: 32, 32>}, {pipeline_mode = #tpu.pipeline_mode<synchronous>, transform_indices = @transform_7, window_bounds = array<i64: 1, 32>}, {transform_indices = @transform_8, window_bounds = array<i64: 8, 32>}]} {
    %c0 = arith.constant 0 : index
    %c0_0 = arith.constant 0 : index
    %0 = vector.load %arg1[%c0, %c0_0] : memref<8x16xf32, #tpu.memory_space<vmem>>, vector<8x16xf32>
    %c0_1 = arith.constant 0 : index
    %c0_2 = arith.constant 0 : index
    %1 = vector.load %arg3[%c0_1, %c0_2] : memref<16x32xf32, #tpu.memory_space<vmem>>, vector<16x32xf32>
    %cst = arith.constant dense<0.000000e+00> : vector<8x32xf32>
    %2 = tpu.matmul %0, %1, %cst {dimension_numbers = #tpu.dot_dimension_numbers<[1], [0], [0], [1], [0, 0, 1, 1], [], []>} : vector<8x16xf32>, vector<16x32xf32>, vector<8x32xf32> -> vector<8x32xf32>
    %c0_3 = arith.constant 0 : index
    %c0_4 = arith.constant 0 : index
    %3 = vector.load %arg4[%c0_3, %c0_4] : memref<1x32xf32, #tpu.memory_space<vmem>>, vector<1x32xf32>
    %4 = vector.broadcast %3 : vector<1x32xf32> to vector<8x32xf32>
    %5 = arith.addf %2, %4 : vector<8x32xf32>
    %cst_5 = arith.constant 0.000000e+00 : f32
    %6 = vector.broadcast %cst_5 : f32 to vector<8x32xf32>
    %7 = arith.maximumf %5, %6 : vector<8x32xf32>
    %c0_6 = arith.constant 0 : index
    %c0_7 = arith.constant 0 : index
    %8 = vector.load %arg2[%c0_6, %c0_7] : memref<8x64xf32, #tpu.memory_space<vmem>>, vector<8x64xf32>
    %c0_8 = arith.constant 0 : index
    %c0_9 = arith.constant 0 : index
    %9 = vector.load %arg5[%c0_8, %c0_9] : memref<64x32xf32, #tpu.memory_space<vmem>>, vector<64x32xf32>
    %cst_10 = arith.constant dense<0.000000e+00> : vector<8x32xf32>
    %10 = tpu.matmul %8, %9, %cst_10 {dimension_numbers = #tpu.dot_dimension_numbers<[1], [0], [0], [1], [0, 0, 1, 1], [], []>} : vector<8x64xf32>, vector<64x32xf32>, vector<8x32xf32> -> vector<8x32xf32>
    %c0_11 = arith.constant 0 : index
    %c0_12 = arith.constant 0 : index
    %11 = vector.load %arg6[%c0_11, %c0_12] : memref<1x32xf32, #tpu.memory_space<vmem>>, vector<1x32xf32>
    %12 = vector.broadcast %11 : vector<1x32xf32> to vector<8x32xf32>
    %13 = arith.addf %10, %12 : vector<8x32xf32>
    %cst_13 = arith.constant 0.000000e+00 : f32
    %14 = vector.broadcast %cst_13 : f32 to vector<8x32xf32>
    %15 = arith.maximumf %13, %14 : vector<8x32xf32>
    %16 = arith.addf %7, %15 : vector<8x32xf32>
    %c0_14 = arith.constant 0 : index
    %c0_15 = arith.constant 0 : index
    %17 = vector.load %arg7[%c0_14, %c0_15] : memref<32x32xf32, #tpu.memory_space<vmem>>, vector<32x32xf32>
    %cst_16 = arith.constant dense<0.000000e+00> : vector<8x32xf32>
    %18 = tpu.matmul %16, %17, %cst_16 {dimension_numbers = #tpu.dot_dimension_numbers<[1], [0], [0], [1], [0, 0, 1, 1], [], []>} : vector<8x32xf32>, vector<32x32xf32>, vector<8x32xf32> -> vector<8x32xf32>
    %c0_17 = arith.constant 0 : index
    %c0_18 = arith.constant 0 : index
    %19 = vector.load %arg8[%c0_17, %c0_18] : memref<1x32xf32, #tpu.memory_space<vmem>>, vector<1x32xf32>
    %20 = vector.broadcast %19 : vector<1x32xf32> to vector<8x32xf32>
    %21 = arith.addf %18, %20 : vector<8x32xf32>
    %cst_19 = arith.constant 0.000000e+00 : f32
    %22 = vector.broadcast %cst_19 : f32 to vector<8x32xf32>
    %23 = arith.maximumf %21, %22 : vector<8x32xf32>
    %c0_20 = arith.constant 0 : index
    %c0_21 = arith.constant 0 : index
    %24 = vector.load %arg9[%c0_20, %c0_21] : memref<8x32xf32, #tpu.memory_space<vmem>>, vector<8x32xf32>
    tpu.vector_store %arg9[%c0_20, %c0_21], %23 {strides = array<i32>} : memref<8x32xf32, #tpu.memory_space<vmem>>, vector<8x32xf32>,
    return
  }
  func.func @transform_0(%arg0: i32) -> (i32, i32) {
    %c0_i32 = arith.constant 0 : i32
    %c0_i32_0 = arith.constant 0 : i32
    return %arg0, %c0_i32 : i32, i32
  }
  func.func @transform_1(%arg0: i32) -> (i32, i32) {
    %c0_i32 = arith.constant 0 : i32
    %c0_i32_0 = arith.constant 0 : i32
    return %arg0, %c0_i32 : i32, i32
  }
  func.func @transform_2(%arg0: i32) -> (i32, i32) {
    %c0_i32 = arith.constant 0 : i32
    %c0_i32_0 = arith.constant 0 : i32
    %c0_i32_1 = arith.constant 0 : i32
    return %c0_i32, %c0_i32_0 : i32, i32
  }
  func.func @transform_3(%arg0: i32) -> (i32, i32) {
    %c0_i32 = arith.constant 0 : i32
    %c0_i32_0 = arith.constant 0 : i32
    %c0_i32_1 = arith.constant 0 : i32
    return %c0_i32, %c0_i32_0 : i32, i32
  }
  func.func @transform_4(%arg0: i32) -> (i32, i32) {
    %c0_i32 = arith.constant 0 : i32
    %c0_i32_0 = arith.constant 0 : i32
    %c0_i32_1 = arith.constant 0 : i32
    return %c0_i32, %c0_i32_0 : i32, i32
  }
  func.func @transform_5(%arg0: i32) -> (i32, i32) {
    %c0_i32 = arith.constant 0 : i32
    %c0_i32_0 = arith.constant 0 : i32
    %c0_i32_1 = arith.constant 0 : i32
    return %c0_i32, %c0_i32_0 : i32, i32
  }
  func.func @transform_6(%arg0: i32) -> (i32, i32) {
    %c0_i32 = arith.constant 0 : i32
    %c0_i32_0 = arith.constant 0 : i32
    %c0_i32_1 = arith.constant 0 : i32
    return %c0_i32, %c0_i32_0 : i32, i32
  }
  func.func @transform_7(%arg0: i32) -> (i32, i32) {
    %c0_i32 = arith.constant 0 : i32
    %c0_i32_0 = arith.constant 0 : i32
    %c0_i32_1 = arith.constant 0 : i32
    return %c0_i32, %c0_i32_0 : i32, i32
  }
  func.func @transform_8(%arg0: i32) -> (i32, i32) {
    %c0_i32 = arith.constant 0 : i32
    %c0_i32_0 = arith.constant 0 : i32
    return %arg0, %c0_i32 : i32, i32
  }
}

</mosaic_0001>

<llo_original>
// kernel: tpu_custom_call.1
$region0: #{tpu_custom_call.1}
  #allocation0 [shape = 'u32[]', space=smem, size = 0x4, offset = 0x4, fixed_abs, tag = 'smem constant byte address 0x4 - core index']
  #allocation1 [shape = 'u32[144,128]{1,0:T(1,128)}', space=vmem, size = 0x12000, scoped, tag = 'internal scratch']
  %s0 = inlined_call_operand.vmem [shape: f32[8,16], index: 0, kind: input, shape index: {}]
  %s1 = inlined_call_operand.vmem [shape: f32[8,64], index: 1, kind: input, shape index: {}]
  %s2 = inlined_call_operand.vmem [shape: f32[16,32], index: 2, kind: input, shape index: {}]
  %s3 = inlined_call_operand.vmem [shape: f32[1,32], index: 3, kind: input, shape index: {}]
  %s4 = inlined_call_operand.vmem [shape: f32[64,32], index: 4, kind: input, shape index: {}]
  %s5 = inlined_call_operand.vmem [shape: f32[1,32], index: 5, kind: input, shape index: {}]
  %s6 = inlined_call_operand.vmem [shape: f32[32,32], index: 6, kind: input, shape index: {}]
  %s7 = inlined_call_operand.vmem [shape: f32[1,32], index: 7, kind: input, shape index: {}]
  %s8 = inlined_call_operand.hbm [shape: f32[8,32], index: 8, kind: output, shape index: {}]
  %s9 = sld [smem:[#allocation0]]
  $region42: #{tpu_custom_call.1} parent=0
    _
  %s11 = ssub.s32 1, %s9
  %s12 = scalar_select 0, %s11, %s9
  $region1: #{tpu_custom_call.1} parent=0
    #allocation2 [shape = 'u8[4096]{0}', space=vmem, size = 0x1000, scoped, tag = 'output window, operand 0, single buffered']
    #allocation3 [shape = 's32[1]{0}', space=sflag, size = 0x4, scoped, tag = 'scoped memory for tpu_custom_call.1']
    %13 = vsyncpa [#allocation3], 0
    // Predicated region
    $region2: #{tpu_custom_call.1} parent=1 // pred_check
      _
    $region3: #{tpu_custom_call.1} parent=1 // pred_check_branch
      %15 = sbr.rel (0) target = $region5
    $region4: #{tpu_custom_call.1} parent=1 // pred_region
      _
    $region5: #{tpu_custom_call.1} parent=1 // pred_fallthru
      _
    // Predicated region
    $region6: #{tpu_custom_call.1} parent=1 // pred_check
      _
    $region7: #{tpu_custom_call.1} parent=1 // pred_check_branch
      %17 = sbr.rel (0) target = $region9
    $region8: #{tpu_custom_call.1} parent=1 // pred_region
      _
    $region9: #{tpu_custom_call.1} parent=1 // pred_fallthru
      _
    // Predicated region
    $region10: #{tpu_custom_call.1} parent=1 // pred_check
      _
    $region11: #{tpu_custom_call.1} parent=1 // pred_check_branch
      %19 = sbr.rel (0) target = $region13
    $region12: #{tpu_custom_call.1} parent=1 // pred_region
      _
    $region13: #{tpu_custom_call.1} parent=1 // pred_fallthru
      _
    // Predicated region
    $region14: #{tpu_custom_call.1} parent=1 // pred_check
      _
    $region15: #{tpu_custom_call.1} parent=1 // pred_check_branch
      %21 = sbr.rel (0) target = $region17
    $region16: #{tpu_custom_call.1} parent=1 // pred_region
      _
    $region17: #{tpu_custom_call.1} parent=1 // pred_fallthru
      _
    // Predicated region
    $region18: #{tpu_custom_call.1} parent=1 // pred_check
      _
    $region19: #{tpu_custom_call.1} parent=1 // pred_check_branch
      %23 = sbr.rel (0) target = $region21
    $region20: #{tpu_custom_call.1} parent=1 // pred_region
      _
    $region21: #{tpu_custom_call.1} parent=1 // pred_fallthru
      _
    // Predicated region
    $region22: #{tpu_custom_call.1} parent=1 // pred_check
      _
    $region23: #{tpu_custom_call.1} parent=1 // pred_check_branch
      %25 = sbr.rel (0) target = $region25
    $region24: #{tpu_custom_call.1} parent=1 // pred_region
      _
    $region25: #{tpu_custom_call.1} parent=1 // pred_fallthru
      _
    // Predicated region
    $region26: #{tpu_custom_call.1} parent=1 // pred_check
      _
    $region27: #{tpu_custom_call.1} parent=1 // pred_check_branch
      %27 = sbr.rel (0) target = $region29
    $region28: #{tpu_custom_call.1} parent=1 // pred_region
      _
    $region29: #{tpu_custom_call.1} parent=1 // pred_fallthru
      _
    // Predicated region
    $region30: #{tpu_custom_call.1} parent=1 // pred_check
      _
    $region31: #{tpu_custom_call.1} parent=1 // pred_check_branch
      %29 = sbr.rel (0) target = $region33
    $region32: #{tpu_custom_call.1} parent=1 // pred_region
      _
    $region33: #{tpu_custom_call.1} parent=1 // pred_fallthru
      _
    %v30 = vld [vmem:[%s0] sm:$0xff]
    %v31 = vld [vmem:[%s2] sm:$0xff]
    %v32 = vld [vmem:[%s2 + $0x8] sm:$0xff]
    %v33 = vld [vmem:[%s3] sm:$0x1]
    %v35 = vlaneseq
    %v36 = vshrl.u32 %v35, 7
    %v37 = vsub.s32 0, %v36
    %v38 = vrot.slane %v33, %v37
    %vm40 = vcmask 130048
    %v42 = vsel %vm40, %v30, 0
    %44 = vmatprep.subr.mxu0 0.0
    %45 = vmatpush1.msra.mxu0 %v31
    %46 = vmatprep.subr.mxu0 0.0
    %47 = vmatpush1.msra.mxu0 %v32
    %48 = vmatprep.subr.mxu0 0.0
    %49 = vmatpush1.msra.mxu0 0.0
    %50 = vmatprep.subr.mxu0 0.0
    %51 = vmatpush1.msra.mxu0 0.0
    %52 = vmatprep.subr.mxu0 0.0
    %53 = vmatpush1.msra.mxu0 0.0
    %54 = vmatprep.subr.mxu0 0.0
    %55 = vmatpush1.msra.mxu0 0.0
    %56 = vmatprep.subr.mxu0 0.0
    %57 = vmatpush1.msra.mxu0 0.0
    %58 = vmatprep.subr.mxu0 0.0
    %59 = vmatpush1.msra.mxu0 0.0
    %60 = vmatprep.subr.mxu0 0.0
    %61 = vmatpush1.msra.mxu0 0.0
    %62 = vmatprep.subr.mxu0 0.0
    %63 = vmatpush1.msra.mxu0 0.0
    %64 = vmatprep.subr.mxu0 0.0
    %65 = vmatpush1.msra.mxu0 0.0
    %66 = vmatprep.subr.mxu0 0.0
    %67 = vmatpush1.msra.mxu0 0.0
    %68 = vmatprep.subr.mxu0 0.0
    %69 = vmatpush1.msra.mxu0 0.0
    %70 = vmatprep.subr.mxu0 0.0
    %71 = vmatpush1.msra.mxu0 0.0
    %72 = vmatprep.subr.mxu0 0.0
    %73 = vmatpush1.msra.mxu0 0.0
    %74 = vmatprep.subr.mxu0 0.0
    %75 = vmatpush1.msra.mxu0 0.0
    %76 = vmatprep.subr.mxu0 0.0
    %77 = vmatpush1.msra.mxu0 0.0
    %78 = vmatprep.subr.mxu0 0.0
    %79 = vmatpush1.msra.mxu0 0.0
    %80 = vmatprep.subr.mxu0 0.0
    %81 = vmatpush1.msra.mxu0 0.0
    %82 = vmatprep.subr.mxu0 0.0
    %83 = vmatpush1.msra.mxu0 0.0
    %84 = vmatprep.subr.mxu0 0.0
    %85 = vmatpush1.msra.mxu0 0.0
    %86 = vmatprep.subr.mxu0 0.0
    %87 = vmatpush1.msra.mxu0 0.0
    %88 = vmatprep.subr.mxu0 0.0
    %89 = vmatpush1.msra.mxu0 0.0
    %90 = vmatprep.subr.mxu0 0.0
    %91 = vmatpush1.msra.mxu0 0.0
    %92 = vmatprep.subr.mxu0 0.0
    %93 = vmatpush1.msra.mxu0 0.0
    %94 = vmatprep.subr.mxu0 0.0
    %95 = vmatpush1.msra.mxu0 0.0
    %96 = vmatprep.subr.mxu0 0.0
    %97 = vmatpush1.msra.mxu0 0.0
    %98 = vmatprep.subr.mxu0 0.0
    %99 = vmatpush1.msra.mxu0 0.0
    %100 = vmatprep.subr.mxu0 0.0
    %101 = vmatpush1.msra.mxu0 0.0
    %102 = vmatprep.subr.mxu0 0.0
    %103 = vmatpush1.msra.mxu0 0.0
    %104 = vmatprep.subr.mxu0 0.0
    %105 = vmatpush1.msra.mxu0 0.0
    %106 = vmatprep.subr.mxu0 0.0
    %107 = vmatpush1.msra.mxu0 0.0
    %108 = vmatprep.mubr.f32.mxu0 0.0
    %109 = vmatmul.mubr.f32.gmra.mrb[0].mxu0 %v42
    %v110 = vpop.f32.mrb[0].mxu0
    %v111 = vadd.f32 %v38, %v110
    %v112 = vpop.f32.mrb[0].mxu0
    %113 = vdwg.mxu0
    %v114 = vmax.f32 %v111, 0.0
    %v115 = vld [vmem:[%s1] sm:$0xff]
    %v116 = vld [vmem:[%s4] sm:$0xff]
    %v117 = vld [vmem:[%s4 + $0x8] sm:$0xff]
    %v118 = vld [vmem:[%s4 + $0x10] sm:$0xff]
    %v119 = vld [vmem:[%s4 + $0x18] sm:$0xff]
    %v120 = vld [vmem:[%s4 + $0x20] sm:$0xff]
    %v121 = vld [vmem:[%s4 + $0x28] sm:$0xff]
    %v122 = vld [vmem:[%s4 + $0x30] sm:$0xff]
    %v123 = vld [vmem:[%s4 + $0x38] sm:$0xff]
    %v124 = vld [vmem:[%s5] sm:$0x1]
    %v126 = vlaneseq
    %v127 = vshrl.u32 %v126, 7
    %v128 = vsub.s32 0, %v127
    %v129 = vrot.slane %v124, %v128
    %vm131 = vcmask 523264
    %v133 = vsel %vm131, %v115, 0
    %135 = vmatprep.subr.mxu0 0.0
    %136 = vmatpush1.msra.mxu0 %v116
    %137 = vmatprep.subr.mxu0 0.0
    %138 = vmatpush1.msra.mxu0 %v117
    %139 = vmatprep.subr.mxu0 0.0
    %140 = vmatpush1.msra.mxu0 %v118
    %141 = vmatprep.subr.mxu0 0.0
    %142 = vmatpush1.msra.mxu0 %v119
    %143 = vmatprep.subr.mxu0 0.0
    %144 = vmatpush1.msra.mxu0 %v120
    %145 = vmatprep.subr.mxu0 0.0
    %146 = vmatpush1.msra.mxu0 %v121
    %147 = vmatprep.subr.mxu0 0.0
    %148 = vmatpush1.msra.mxu0 %v122
    %149 = vmatprep.subr.mxu0 0.0
    %150 = vmatpush1.msra.mxu0 %v123
    %151 = vmatprep.subr.mxu0 0.0
    %152 = vmatpush1.msra.mxu0 0.0
    %153 = vmatprep.subr.mxu0 0.0
    %154 = vmatpush1.msra.mxu0 0.0
    %155 = vmatprep.subr.mxu0 0.0
    %156 = vmatpush1.msra.mxu0 0.0
    %157 = vmatprep.subr.mxu0 0.0
    %158 = vmatpush1.msra.mxu0 0.0
    %159 = vmatprep.subr.mxu0 0.0
    %160 = vmatpush1.msra.mxu0 0.0
    %161 = vmatprep.subr.mxu0 0.0
    %162 = vmatpush1.msra.mxu0 0.0
    %163 = vmatprep.subr.mxu0 0.0
    %164 = vmatpush1.msra.mxu0 0.0
    %165 = vmatprep.subr.mxu0 0.0
    %166 = vmatpush1.msra.mxu0 0.0
    %167 = vmatprep.subr.mxu0 0.0
    %168 = vmatpush1.msra.mxu0 0.0
    %169 = vmatprep.subr.mxu0 0.0
    %170 = vmatpush1.msra.mxu0 0.0
    %171 = vmatprep.subr.mxu0 0.0
    %172 = vmatpush1.msra.mxu0 0.0
    %173 = vmatprep.subr.mxu0 0.0
    %174 = vmatpush1.msra.mxu0 0.0
    %175 = vmatprep.subr.mxu0 0.0
    %176 = vmatpush1.msra.mxu0 0.0
    %177 = vmatprep.subr.mxu0 0.0
    %178 = vmatpush1.msra.mxu0 0.0
    %179 = vmatprep.subr.mxu0 0.0
    %180 = vmatpush1.msra.mxu0 0.0
    %181 = vmatprep.subr.mxu0 0.0
    %182 = vmatpush1.msra.mxu0 0.0
    %183 = vmatprep.subr.mxu0 0.0
    %184 = vmatpush1.msra.mxu0 0.0
    %185 = vmatprep.subr.mxu0 0.0
    %186 = vmatpush1.msra.mxu0 0.0
    %187 = vmatprep.subr.mxu0 0.0
    %188 = vmatpush1.msra.mxu0 0.0
    %189 = vmatprep.subr.mxu0 0.0
    %190 = vmatpush1.msra.mxu0 0.0
    %191 = vmatprep.subr.mxu0 0.0
    %192 = vmatpush1.msra.mxu0 0.0
    %193 = vmatprep.subr.mxu0 0.0
    %194 = vmatpush1.msra.mxu0 0.0
    %195 = vmatprep.subr.mxu0 0.0
    %196 = vmatpush1.msra.mxu0 0.0
    %197 = vmatprep.subr.mxu0 0.0
    %198 = vmatpush1.msra.mxu0 0.0
    %199 = vmatprep.mubr.f32.mxu0 0.0
    %200 = vmatmul.mubr.f32.gmra.mrb[0].mxu0 %v133
    %v201 = vpop.f32.mrb[0].mxu0
    %v202 = vadd.f32 %v129, %v201
    %v203 = vpop.f32.mrb[0].mxu0
    %204 = vdwg.mxu0
    %v205 = vmax.f32 %v202, 0.0
    %v206 = vadd.f32 %v114, %v205
    %v207 = vld [vmem:[%s6] sm:$0xff]
    %v208 = vld [vmem:[%s6 + $0x8] sm:$0xff]
    %v209 = vld [vmem:[%s6 + $0x10] sm:$0xff]
    %v210 = vld [vmem:[%s6 + $0x18] sm:$0xff]
    %v211 = vld [vmem:[%s7] sm:$0x1]
    %v213 = vlaneseq
    %v214 = vshrl.u32 %v213, 7
    %v215 = vsub.s32 0, %v214
    %v216 = vrot.slane %v211, %v215
    %vm218 = vcmask 261120
    %v220 = vsel %vm218, %v206, 0
    %222 = vmatprep.subr.mxu0 0.0
    %223 = vmatpush1.msra.mxu0 %v207
    %224 = vmatprep.subr.mxu0 0.0
    %225 = vmatpush1.msra.mxu0 %v208
    %226 = vmatprep.subr.mxu0 0.0
    %227 = vmatpush1.msra.mxu0 %v209
    %228 = vmatprep.subr.mxu0 0.0
    %229 = vmatpush1.msra.mxu0 %v210
    %230 = vmatprep.subr.mxu0 0.0
    %231 = vmatpush1.msra.mxu0 0.0
    %232 = vmatprep.subr.mxu0 0.0
    %233 = vmatpush1.msra.mxu0 0.0
    %234 = vmatprep.subr.mxu0 0.0
    %235 = vmatpush1.msra.mxu0 0.0
    %236 = vmatprep.subr.mxu0 0.0
    %237 = vmatpush1.msra.mxu0 0.0
    %238 = vmatprep.subr.mxu0 0.0
    %239 = vmatpush1.msra.mxu0 0.0
    %240 = vmatprep.subr.mxu0 0.0
    %241 = vmatpush1.msra.mxu0 0.0
    %242 = vmatprep.subr.mxu0 0.0
    %243 = vmatpush1.msra.mxu0 0.0
    %244 = vmatprep.subr.mxu0 0.0
    %245 = vmatpush1.msra.mxu0 0.0
    %246 = vmatprep.subr.mxu0 0.0
    %247 = vmatpush1.msra.mxu0 0.0
    %248 = vmatprep.subr.mxu0 0.0
    %249 = vmatpush1.msra.mxu0 0.0
    %250 = vmatprep.subr.mxu0 0.0
    %251 = vmatpush1.msra.mxu0 0.0
    %252 = vmatprep.subr.mxu0 0.0
    %253 = vmatpush1.msra.mxu0 0.0
    %254 = vmatprep.subr.mxu0 0.0
    %255 = vmatpush1.msra.mxu0 0.0
    %256 = vmatprep.subr.mxu0 0.0
    %257 = vmatpush1.msra.mxu0 0.0
    %258 = vmatprep.subr.mxu0 0.0
    %259 = vmatpush1.msra.mxu0 0.0
    %260 = vmatprep.subr.mxu0 0.0
    %261 = vmatpush1.msra.mxu0 0.0
    %262 = vmatprep.subr.mxu0 0.0
    %263 = vmatpush1.msra.mxu0 0.0
    %264 = vmatprep.subr.mxu0 0.0
    %265 = vmatpush1.msra.mxu0 0.0
    %266 = vmatprep.subr.mxu0 0.0
    %267 = vmatpush1.msra.mxu0 0.0
    %268 = vmatprep.subr.mxu0 0.0
    %269 = vmatpush1.msra.mxu0 0.0
    %270 = vmatprep.subr.mxu0 0.0
    %271 = vmatpush1.msra.mxu0 0.0
    %272 = vmatprep.subr.mxu0 0.0
    %273 = vmatpush1.msra.mxu0 0.0
    %274 = vmatprep.subr.mxu0 0.0
    %275 = vmatpush1.msra.mxu0 0.0
    %276 = vmatprep.subr.mxu0 0.0
    %277 = vmatpush1.msra.mxu0 0.0
    %278 = vmatprep.subr.mxu0 0.0
    %279 = vmatpush1.msra.mxu0 0.0
    %280 = vmatprep.subr.mxu0 0.0
    %281 = vmatpush1.msra.mxu0 0.0
    %282 = vmatprep.subr.mxu0 0.0
    %283 = vmatpush1.msra.mxu0 0.0
    %284 = vmatprep.subr.mxu0 0.0
    %285 = vmatpush1.msra.mxu0 0.0
    %286 = vmatprep.mubr.f32.mxu0 0.0
    %287 = vmatmul.mubr.f32.gmra.mrb[0].mxu0 %v220
    %v288 = vpop.f32.mrb[0].mxu0
    %v289 = vadd.f32 %v216, %v288
    %v290 = vpop.f32.mrb[0].mxu0
    %291 = vdwg.mxu0
    %v292 = vmax.f32 %v289, 0.0
    %293 = vst.msk [vmem:[#allocation2] sm:$0xff] %vm218, %v292
    // Predicated region
    $region34: #{tpu_custom_call.1} parent=1 // pred_check
      _
    $region35: #{tpu_custom_call.1} parent=1 // pred_check_branch
      %295 = sbr.rel (0) target = $region37
    $region36: #{tpu_custom_call.1} parent=1 // pred_region
      %s297 = ssub.s32 128, 128
      %298 = vsyncadd [#allocation3], %s297
      %s300 = sshll.u32 [#allocation2], 4
      %s301 = int_to_ptr.vmem [resolvable:$true] %s300
      %303 = dma.vmem_to_hbm [thread:$0]  %s301, 128, %s8, [#allocation3]
    $region37: #{tpu_custom_call.1} parent=1 // pred_fallthru
      _
    // Predicated region
    $region38: #{tpu_custom_call.1} parent=1 // pred_check
      _
    $region39: #{tpu_custom_call.1} parent=1 // pred_check_branch
      %305 = sbr.rel (0) target = $region41
    $region40: #{tpu_custom_call.1} parent=1 // pred_region
      %306 = dma.done [#allocation3], 128
    $region41: #{tpu_custom_call.1} parent=1 // pred_fallthru
      _
    %307 = vsyncpa [#allocation3], 1

</llo_original>
